<compile_context>
chip_gen: v6e
topology: v6e:2x2x1
jax: 0.10.0
libtpu: 0.0.40
codegen_flags: <defaults>
</compile_context>

<pallas_src>
import functools

import jax
import jax.numpy as jnp
from jax.experimental import pallas as pl
from jax.experimental.pallas import tpu as pltpu

_LANE = 128
_SUBLANE = 8


def _round_up(x, m):
    return (x + m - 1) // m * m


def _vmem_budget_bytes():
    """~85% of physical VMEM: leaves headroom on v7x (64 MiB total) while
    using more than the 64 MiB default on v5e/v6e (128 MiB total)."""
    cap = None
    try:
        cap = getattr(pltpu.get_tpu_info(), "vmem_capacity_bytes", None)
    except Exception:
        cap = None
    if not cap:
        cap = 64 * 1024 * 1024
    return int(cap * 0.85)


def _derive_batch_tile(b_total, seq, d, kp, budget_bytes, max_tile=512):
    """Largest sublane-aligned batch tile whose working set fits the budget.

    Per-tile VMEM:
      hidden : 2 (double buffer) * TB*S*D*2 B  (bf16, streamed -> biggest lever)
      pool_w : 2 * TB*S*4 B                    (f32)
      out    : 2 * TB*Kp*4 B                   (f32)
      weight : D*Kp*2 B                        (grid-invariant, single-buffered)
    """
    fixed = d * kp * 2
    per_row = 2 * seq * d * 2 + 2 * seq * 4 + 2 * kp * 4
    avail = max(budget_bytes - fixed, per_row * _SUBLANE)
    tb = max(_SUBLANE, (avail // per_row) // _SUBLANE * _SUBLANE)
    tb = min(tb, max_tile, _round_up(b_total, _SUBLANE))
    # Keep >=2 grid steps when the batch allows, so the parallel batch axis
    # can shard across both TensorCores (v7x); a single giant step leaves one
    # core idle.
    if b_total >= 2 * _SUBLANE:
        tb = min(tb, _round_up((b_total + 1) // 2, _SUBLANE))
    return tb


def _embed_kernel(w_ref, hidden_ref, wt_ref, out_ref, *, normalize: bool):
    """VPU weighted pooling -> MXU projection -> optional L2 normalize."""
    # Pooling on the VPU (an M=1 batched MXU contraction would waste MXU
    # weight-load cycles): pooled[b,d] = sum_s w[b,s] * hidden[b,s,d], f32 acc.
    w = w_ref[...]                                   # [TB, S] f32 (kept f32)
    h = hidden_ref[...].astype(jnp.float32)          # [TB, S, D] widen (free filler at mem-bound)
    pooled = jnp.sum(h * w[:, :, None], axis=1)      # [TB, D] f32, no relayout of the result

    # Projection with the matryoshka selection folded into wt ([D, Kp],
    # zero-padded so Kp is a lane-dense multiple of 128).
    proj = jnp.dot(pooled.astype(wt_ref.dtype), wt_ref[...],
                   preferred_element_type=jnp.float32)   # [TB, Kp] f32

    if normalize:
        # F.normalize(p=2, dim=-1): x / max(||x||, 1e-12) == x * rsqrt(max(ssq, 1e-24))
        # (padded weight columns are zero so they do not perturb the norm).
        ssq = jnp.sum(proj * proj, axis=-1, keepdims=True)
        proj = proj * jax.lax.rsqrt(jnp.maximum(ssq, 1e-24))

    out_ref[...] = proj.astype(out_ref.dtype)


def _build_pallas_embed(B, S, D, Kp, batch_tile, normalize, vmem_limit,
                        single_buffer_weight):
    kernel = functools.partial(_embed_kernel, normalize=normalize)
    if single_buffer_weight:
        # Grid-invariant weight: one buffer instead of the default two.
        wt_spec = pl.BlockSpec((D, Kp), lambda i: (0, 0),
                               pipeline_mode=pl.Buffered(1))
    else:
        wt_spec = pl.BlockSpec((D, Kp), lambda i: (0, 0))
    cost = pl.CostEstimate(
        flops=2 * B * S * D + 2 * B * D * Kp,
        transcendentals=0,
        bytes_accessed=B * S * D * 2 + B * S * 4 + D * Kp * 2 + B * Kp * 4,
    )
    return pl.pallas_call(
        kernel,
        out_shape=jax.ShapeDtypeStruct((B, Kp), jnp.float32),
        grid=(B // batch_tile,),
        in_specs=[
            pl.BlockSpec((batch_tile, S), lambda i: (i, 0)),        # pool weights f32
            pl.BlockSpec((batch_tile, S, D), lambda i: (i, 0, 0)),  # hidden bf16
            wt_spec,                                                # weight bf16
        ],
        out_specs=pl.BlockSpec((batch_tile, Kp), lambda i: (i, 0)),
        compiler_params=pltpu.CompilerParams(
            dimension_semantics=("parallel",),   # shard batch tiles across cores
            vmem_limit_bytes=vmem_limit,
        ),
        cost_estimate=cost,
    )


def pallas_embed(pool_w, hidden, wt_sel, *, normalize=True, batch_tile=8,
                 vmem_limit_bytes=None):
    """pool_w [B,S] f32, hidden [B,S,D] bf16, wt_sel [D,Kp] bf16 -> [B,Kp] f32.

    B must be a multiple of batch_tile; Kp must be a multiple of 128.
    """
    B, S, D = hidden.shape
    Dw, Kp = wt_sel.shape
    assert Dw == D and B % batch_tile == 0 and Kp % _LANE == 0
    vmem_limit = vmem_limit_bytes or _vmem_budget_bytes()
    try:
        fn = _build_pallas_embed(B, S, D, Kp, batch_tile, normalize,
                                 vmem_limit, single_buffer_weight=True)
        return fn(pool_w, hidden, wt_sel)
    except Exception:
        # Fallback if pl.Buffered(1) is rejected by this jax/Mosaic version.
        fn = _build_pallas_embed(B, S, D, Kp, batch_tile, normalize,
                                 vmem_limit, single_buffer_weight=False)
        return fn(pool_w, hidden, wt_sel)


def pooling_weights(attention_mask, pool_type):
    """Per-row pooling weights, O(S), kept in f32 (the tensor is tiny).

    NOTE: matches the PyTorch reference exactly — no epsilon on the
    denominator; an all-zero attention_mask row yields NaN/Inf (footgun).
    """
    m = attention_mask.astype(jnp.float32)
    if pool_type == "position_weight":
        cw = jnp.cumsum(m, axis=-1)
        return cw / jnp.sum(cw, axis=-1, keepdims=True)
    if pool_type == "mean":
        return m / jnp.sum(m, axis=-1, keepdims=True)
    raise ValueError(f"unsupported pool_type {pool_type}")


class PallasBaseEmbedder:
    """JAX/Pallas counterpart of BaseEmbedder.forward (synthetic parameters)."""

    def __init__(self, vocab_size, backbone_dim, embed_dim, *,
                 pool_type="position_weight", mytryoshka_indexes=None,
                 normalize=True, batch_tile=None, seed=0):
        if pool_type not in ("position_weight", "mean"):
            # TODO(synk): 'cls'/'eos' pooling not implemented in the kernel.
            raise ValueError(f"unsupported pool_type {pool_type}")
        k_emb, k_proj = jax.random.split(jax.random.PRNGKey(seed))
        # surrogate backbone: deterministic token-embedding table [V, D]
        self.emb_table = 0.02 * jax.random.normal(
            k_emb, (vocab_size, backbone_dim), jnp.float32)
        # nn.Linear(backbone_dim, embed_dim, bias=False) weight: [E, D]
        w = jax.random.normal(k_proj, (embed_dim, backbone_dim),
                              jnp.float32) / jnp.sqrt(float(backbone_dim))
        # Fold matryoshka index_select into the projection weight -> [D, K],
        # then zero-pad K up to a lane-dense multiple of 128 and store bf16.
        if mytryoshka_indexes:
            idx = jnp.asarray(mytryoshka_indexes, jnp.int32)
            w_sel = w[idx, :]                      # [K, D]
        else:
            w_sel = w                              # [E, D]
        self.out_dim = int(w_sel.shape[0])
        kp = _LANE * pl.cdiv(self.out_dim, _LANE)
        wt_sel = jnp.pad(w_sel.T, ((0, 0), (0, kp - self.out_dim)))
        self.wt_sel = wt_sel.astype(jnp.bfloat16)  # [D, Kp] bf16
        self.pool_type = pool_type
        self.normalize = normalize
        # batch_tile=None -> derive from the per-generation VMEM budget
        # (v7x has HALF the VMEM of v5e/v6e, so it gets a smaller tile).
        self.batch_tile = batch_tile
        self._vmem_budget = _vmem_budget_bytes()

    def _backbone(self, input_ids):
        # TODO(synk): surrogate for the pretrained transformer backbone.
        return jnp.take(self.emb_table, input_ids, axis=0).astype(jnp.bfloat16)

    def _embed_batch(self, input_ids, attention_mask):
        hidden = self._backbone(input_ids)                    # [Bt, S, D] bf16
        w = pooling_weights(attention_mask, self.pool_type)   # [Bt, S] f32
        bt, seq, d = hidden.shape
        kp = self.wt_sel.shape[1]
        tb = self.batch_tile or _derive_batch_tile(bt, seq, d, kp,
                                                   self._vmem_budget)
        b_pad = _round_up(bt, tb)
        if b_pad != bt:   # pad with zero rows (zero pool weight -> zero output)
            hidden = jnp.pad(hidden, ((0, b_pad - bt), (0, 0), (0, 0)))
            w = jnp.pad(w, ((0, b_pad - bt), (0, 0)))
        out = pallas_embed(w, hidden, self.wt_sel,
                           normalize=self.normalize, batch_tile=tb,
                           vmem_limit_bytes=self._vmem_budget)
        return out[:bt, :self.out_dim]

    def embedding(self, input_items):
        return self._embed_batch(input_items["input_ids"],
                                 input_items["attention_mask"])

    def forward(self, q_ids, p_ids, n_list_ids):
        # Batch q / p / all negatives into ONE pallas_call, split afterwards.
        groups = [q_ids]
        has_p = bool(p_ids)
        if has_p:
            groups.append(p_ids)
        n_items = []
        if n_list_ids is not None:
            if not isinstance(n_list_ids, list):
                n_list_ids = [n_list_ids]
            n_items = list(n_list_ids)
            groups.extend(n_items)

        seq = groups[0]["input_ids"].shape[1]
        assert all(g["input_ids"].shape[1] == seq for g in groups), \
            "all inputs must share the sequence length to batch one pallas_call"

        ids = jnp.concatenate([g["input_ids"] for g in groups], axis=0)
        mask = jnp.concatenate([g["attention_mask"] for g in groups], axis=0)
        emb = self._embed_batch(ids, mask)

        splits, off = [], 0
        for g in groups:
            b = g["input_ids"].shape[0]
            splits.append(emb[off:off + b])
            off += b

        q_emb = splits[0]
        p_emb = splits[1] if has_p else None
        n_emb = None
        if n_items:
            start = 2 if has_p else 1
            n_emb = jnp.concatenate([e[:, None, :] for e in splits[start:]],
                                    axis=1)
        return q_emb, p_emb, n_emb


def _make_items(key, batch, seq, vocab, lens):
    ids = jax.random.randint(key, (batch, seq), 0, vocab, dtype=jnp.int32)
    pos = jnp.arange(seq, dtype=jnp.int32)[None, :]
    mask = (pos < jnp.asarray(lens, jnp.int32)[:, None]).astype(jnp.int32)
    return {"input_ids": ids, "attention_mask": mask}


def _reference_embedding(embedder, items):
    """Pure-JAX reference mirroring the kernel's casts (hidden bf16, w f32)."""
    hidden = jnp.take(embedder.emb_table, items["input_ids"], axis=0)
    hidden = hidden.astype(jnp.bfloat16).astype(jnp.float32)
    w = pooling_weights(items["attention_mask"], embedder.pool_type)  # f32
    pooled = jnp.einsum("bs,bsd->bd", w, hidden)
    wt = embedder.wt_sel.astype(jnp.float32)[:, :embedder.out_dim]
    proj = pooled.astype(jnp.bfloat16).astype(jnp.float32) @ wt
    if embedder.normalize:
        nrm = jnp.sqrt(jnp.sum(proj * proj, axis=-1, keepdims=True))
        proj = proj / jnp.maximum(nrm, 1e-12)
    return proj


if __name__ == "__main__":
    VOCAB, SEQ, D_BACKBONE, E_PROJ = 32, 16, 128, 64
    B = 2
    matryoshka = list(range(0, E_PROJ, 2))        # keep 32 of 64 dims

    embedder = PallasBaseEmbedder(
        VOCAB, D_BACKBONE, E_PROJ,
        pool_type="position_weight",
        mytryoshka_indexes=matryoshka,
        normalize=True,
        batch_tile=None,            # auto-derive from the VMEM budget
        seed=0,
    )

    key = jax.random.PRNGKey(0)
    kq, kp, kn1, kn2 = jax.random.split(key, 4)
    q_items = _make_items(kq, B, SEQ, VOCAB, [16, 10])
    p_items = _make_items(kp, B, SEQ, VOCAB, [12, 16])
    n_list = [_make_items(kn1, B, SEQ, VOCAB, [8, 14]),
              _make_items(kn2, B, SEQ, VOCAB, [16, 6])]

    q_emb, p_emb, n_emb = embedder.forward(q_items, p_items, n_list)
    jax.block_until_ready((q_emb, p_emb, n_emb))

    K = len(matryoshka)
    assert q_emb.shape == (B, K)
    assert p_emb.shape == (B, K)
    assert n_emb.shape == (B, len(n_list), K)

    # correctness check against a pure-JAX reference
    q_ref = _reference_embedding(embedder, q_items)
    p_ref = _reference_embedding(embedder, p_items)
    n_ref = jnp.concatenate(
        [_reference_embedding(embedder, n)[:, None, :] for n in n_list], axis=1)
    for got, ref in ((q_emb, q_ref), (p_emb, p_ref), (n_emb, n_ref)):
        err = float(jnp.max(jnp.abs(got - ref)))
        assert err < 2e-2, f"mismatch vs reference: max abs err {err}"

    print("KERNEL_OK")
</pallas_src>

<mosaic_0001>
module attributes {stable_mosaic.version = 11 : i64} {
  func.func @_embed_kernel(%arg0: i32, %arg1: memref<8x16xf32, #tpu.memory_space<vmem>>, %arg2: memref<8x16x128xbf16, #tpu.memory_space<vmem>>, %arg3: memref<128x128xbf16, #tpu.memory_space<vmem>>, %arg4: memref<8x128xf32, #tpu.memory_space<vmem>>) attributes {dimension_semantics = [#tpu.dimension_semantics<parallel>], iteration_bounds = array<i64: 1>, scalar_prefetch = 0 : i64, scratch_operands = 0 : i64, tpu.core_type = #tpu.core_type<tc>, window_params = [{transform_indices = @transform_0, window_bounds = array<i64: 8, 16>}, {transform_indices = @transform_1, window_bounds = array<i64: 8, 16, 128>}, {pipeline_mode = #tpu.pipeline_mode<synchronous>, transform_indices = @transform_2, window_bounds = array<i64: 128, 128>}, {transform_indices = @transform_3, window_bounds = array<i64: 8, 128>}]} {
    %c0 = arith.constant 0 : index
    %c0_0 = arith.constant 0 : index
    %0 = vector.load %arg1[%c0, %c0_0] : memref<8x16xf32, #tpu.memory_space<vmem>>, vector<8x16xf32>
    %c0_1 = arith.constant 0 : index
    %c0_2 = arith.constant 0 : index
    %c0_3 = arith.constant 0 : index
    %1 = vector.load %arg2[%c0_1, %c0_2, %c0_3] : memref<8x16x128xbf16, #tpu.memory_space<vmem>>, vector<8x16x128xbf16>
    %2 = arith.extf %1 : vector<8x16x128xbf16> to vector<8x16x128xf32>
    %3 = vector.shape_cast %0 : vector<8x16xf32> to vector<8x16x1xf32>
    %4 = vector.broadcast %3 : vector<8x16x1xf32> to vector<8x16x128xf32>
    %5 = arith.mulf %2, %4 : vector<8x16x128xf32>
    %cst = arith.constant dense<0.000000e+00> : vector<8x128xf32>
    %6 = vector.multi_reduction <add>, %5, %cst [1] : vector<8x16x128xf32> to vector<8x128xf32>
    %7 = arith.truncf %6 : vector<8x128xf32> to vector<8x128xbf16>
    %c0_4 = arith.constant 0 : index
    %c0_5 = arith.constant 0 : index
    %8 = vector.load %arg3[%c0_4, %c0_5] : memref<128x128xbf16, #tpu.memory_space<vmem>>, vector<128x128xbf16>
    %cst_6 = arith.constant dense<0.000000e+00> : vector<8x128xf32>
    %9 = tpu.matmul %7, %8, %cst_6 {dimension_numbers = #tpu.dot_dimension_numbers<[1], [0], [0], [1], [0, 0, 1, 1], [], []>} : vector<8x128xbf16>, vector<128x128xbf16>, vector<8x128xf32> -> vector<8x128xf32>
    %10 = arith.mulf %9, %9 : vector<8x128xf32>
    %cst_7 = arith.constant dense<0.000000e+00> : vector<8xf32>
    %11 = vector.multi_reduction <add>, %10, %cst_7 [1] : vector<8x128xf32> to vector<8xf32>
    %12 = vector.shape_cast %11 : vector<8xf32> to vector<8x1xf32>
    %cst_8 = arith.constant 1.000000e-24 : f32
    %13 = vector.broadcast %cst_8 : f32 to vector<8x1xf32>
    %14 = arith.maximumf %12, %13 : vector<8x1xf32>
    %15 = math.rsqrt %14 : vector<8x1xf32>
    %16 = vector.broadcast %15 : vector<8x1xf32> to vector<8x128xf32>
    %17 = arith.mulf %9, %16 : vector<8x128xf32>
    %c0_9 = arith.constant 0 : index
    %c0_10 = arith.constant 0 : index
    %18 = vector.load %arg4[%c0_9, %c0_10] : memref<8x128xf32, #tpu.memory_space<vmem>>, vector<8x128xf32>
    tpu.vector_store %arg4[%c0_9, %c0_10], %17 {strides = array<i32>} : memref<8x128xf32, #tpu.memory_space<vmem>>, vector<8x128xf32>,
    return
  }
  func.func @transform_0(%arg0: i32) -> (i32, i32) {
    %c0_i32 = arith.constant 0 : i32
    %c0_i32_0 = arith.constant 0 : i32
    return %arg0, %c0_i32 : i32, i32
  }
  func.func @transform_1(%arg0: i32) -> (i32, i32, i32) {
    %c0_i32 = arith.constant 0 : i32
    %c0_i32_0 = arith.constant 0 : i32
    %c0_i32_1 = arith.constant 0 : i32
    return %arg0, %c0_i32, %c0_i32_0 : i32, i32, i32
  }
  func.func @transform_2(%arg0: i32) -> (i32, i32) {
    %c0_i32 = arith.constant 0 : i32
    %c0_i32_0 = arith.constant 0 : i32
    %c0_i32_1 = arith.constant 0 : i32
    return %c0_i32, %c0_i32_0 : i32, i32
  }
  func.func @transform_3(%arg0: i32) -> (i32, i32) {
    %c0_i32 = arith.constant 0 : i32
    %c0_i32_0 = arith.constant 0 : i32
    return %arg0, %c0_i32 : i32, i32
  }
}

module attributes {stable_mosaic.version = 11 : i64} {
  func.func @_embed_kernel(%arg0: i32, %arg1: memref<8x16xf32, #tpu.memory_space<vmem>>, %arg2: memref<8x16x128xbf16, #tpu.memory_space<vmem>>, %arg3: memref<128x128xbf16, #tpu.memory_space<vmem>>, %arg4: memref<8x128xf32, #tpu.memory_space<vmem>>) attributes {dimension_semantics = [#tpu.dimension_semantics<parallel>], iteration_bounds = array<i64: 1>, scalar_prefetch = 0 : i64, scratch_operands = 0 : i64, tpu.core_type = #tpu.core_type<tc>, window_params = [{transform_indices = @transform_0, window_bounds = array<i64: 8, 16>}, {transform_indices = @transform_1, window_bounds = array<i64: 8, 16, 128>}, {pipeline_mode = #tpu.pipeline_mode<synchronous>, transform_indices = @transform_2, window_bounds = array<i64: 128, 128>}, {transform_indices = @transform_3, window_bounds = array<i64: 8, 128>}]} {
    %c0 = arith.constant 0 : index
    %c0_0 = arith.constant 0 : index
    %0 = vector.load %arg1[%c0, %c0_0] : memref<8x16xf32, #tpu.memory_space<vmem>>, vector<8x16xf32>
    %c0_1 = arith.constant 0 : index
    %c0_2 = arith.constant 0 : index
    %c0_3 = arith.constant 0 : index
    %1 = vector.load %arg2[%c0_1, %c0_2, %c0_3] : memref<8x16x128xbf16, #tpu.memory_space<vmem>>, vector<8x16x128xbf16>
    %2 = arith.extf %1 : vector<8x16x128xbf16> to vector<8x16x128xf32>
    %3 = vector.shape_cast %0 : vector<8x16xf32> to vector<8x16x1xf32>
    %4 = vector.broadcast %3 : vector<8x16x1xf32> to vector<8x16x128xf32>
    %5 = arith.mulf %2, %4 : vector<8x16x128xf32>
    %cst = arith.constant dense<0.000000e+00> : vector<8x128xf32>
    %6 = vector.multi_reduction <add>, %5, %cst [1] : vector<8x16x128xf32> to vector<8x128xf32>
    %7 = arith.truncf %6 : vector<8x128xf32> to vector<8x128xbf16>
    %c0_4 = arith.constant 0 : index
    %c0_5 = arith.constant 0 : index
    %8 = vector.load %arg3[%c0_4, %c0_5] : memref<128x128xbf16, #tpu.memory_space<vmem>>, vector<128x128xbf16>
    %cst_6 = arith.constant dense<0.000000e+00> : vector<8x128xf32>
    %9 = tpu.matmul %7, %8, %cst_6 {dimension_numbers = #tpu.dot_dimension_numbers<[1], [0], [0], [1], [0, 0, 1, 1], [], []>} : vector<8x128xbf16>, vector<128x128xbf16>, vector<8x128xf32> -> vector<8x128xf32>
    %10 = arith.mulf %9, %9 : vector<8x128xf32>
    %cst_7 = arith.constant dense<0.000000e+00> : vector<8xf32>
    %11 = vector.multi_reduction <add>, %10, %cst_7 [1] : vector<8x128xf32> to vector<8xf32>
    %12 = vector.shape_cast %11 : vector<8xf32> to vector<8x1xf32>
    %cst_8 = arith.constant 1.000000e-24 : f32
    %13 = vector.broadcast %cst_8 : f32 to vector<8x1xf32>
    %14 = arith.maximumf %12, %13 : vector<8x1xf32>
    %15 = math.rsqrt %14 : vector<8x1xf32>
    %16 = vector.broadcast %15 : vector<8x1xf32> to vector<8x128xf32>
    %17 = arith.mulf %9, %16 : vector<8x128xf32>
    %c0_9 = arith.constant 0 : index
    %c0_10 = arith.constant 0 : index
    %18 = vector.load %arg4[%c0_9, %c0_10] : memref<8x128xf32, #tpu.memory_space<vmem>>, vector<8x128xf32>
    tpu.vector_store %arg4[%c0_9, %c0_10], %17 {strides = array<i32>} : memref<8x128xf32, #tpu.memory_space<vmem>>, vector<8x128xf32>,
    return
  }
  func.func @transform_0(%arg0: i32) -> (i32, i32) {
    %c0_i32 = arith.constant 0 : i32
    %c0_i32_0 = arith.constant 0 : i32
    return %arg0, %c0_i32 : i32, i32
  }
  func.func @transform_1(%arg0: i32) -> (i32, i32, i32) {
    %c0_i32 = arith.constant 0 : i32
    %c0_i32_0 = arith.constant 0 : i32
    %c0_i32_1 = arith.constant 0 : i32
    return %arg0, %c0_i32, %c0_i32_0 : i32, i32, i32
  }
  func.func @transform_2(%arg0: i32) -> (i32, i32) {
    %c0_i32 = arith.constant 0 : i32
    %c0_i32_0 = arith.constant 0 : i32
    %c0_i32_1 = arith.constant 0 : i32
    return %c0_i32, %c0_i32_0 : i32, i32
  }
  func.func @transform_3(%arg0: i32) -> (i32, i32) {
    %c0_i32 = arith.constant 0 : i32
    %c0_i32_0 = arith.constant 0 : i32
    return %arg0, %c0_i32 : i32, i32
  }
}

</mosaic_0001>

<llo_original>
// kernel: tpu_custom_call.1
$region0: #{tpu_custom_call.1}
  #allocation0 [shape = 'u32[]', space=smem, size = 0x4, offset = 0x4, fixed_abs, tag = 'smem constant byte address 0x4 - core index']
  #allocation1 [shape = 'u32[144,128]{1,0:T(1,128)}', space=vmem, size = 0x12000, scoped, tag = 'internal scratch']
  %s0 = inlined_call_operand.hbm [shape: f32[8,16], index: 0, kind: input, shape index: {}]
  %s1 = inlined_call_operand.hbm [shape: bf16[8,16,128], index: 1, kind: input, shape index: {}]
  %s2 = inlined_call_operand.hbm [shape: bf16[128,128], index: 2, kind: input, shape index: {}]
  %s3 = inlined_call_operand.hbm [shape: f32[8,128], index: 3, kind: output, shape index: {}]
  %s4 = sld [smem:[#allocation0]]
  $region34: #{tpu_custom_call.1} parent=0
    _
  %s6 = ssub.s32 1, %s4
  %s7 = scalar_select 0, %s6, %s4
  $region1: #{tpu_custom_call.1} parent=0
    #allocation2 [shape = 'u8[4096]{0}', space=vmem, size = 0x1000, scoped, tag = 'input window, operand 0, single buffered']
    #allocation3 [shape = 's32[1]{0}', space=sflag, size = 0x4, scoped, tag = 'scoped memory for tpu_custom_call.1']
    #allocation4 [shape = 's32[1]{0}', space=sflag, size = 0x4, scoped, tag = 'scoped memory for tpu_custom_call.1']
    #allocation5 [shape = 'u8[32768]{0}', space=vmem, size = 0x8000, scoped, tag = 'input window, operand 1, single buffered']
    #allocation6 [shape = 's32[1]{0}', space=sflag, size = 0x4, scoped, tag = 'scoped memory for tpu_custom_call.1']
    #allocation7 [shape = 'u8[32768]{0}', space=vmem, size = 0x8000, scoped, tag = 'input window, operand 2, single buffered']
    #allocation8 [shape = 'u8[4096]{0}', space=vmem, size = 0x1000, scoped, tag = 'output window, operand 0, single buffered']
    %8 = vsyncpa [#allocation3], 0
    %9 = vsyncpa [#allocation6], 0
    %10 = vsyncpa [#allocation4], 0
    // Predicated region
    $region2: #{tpu_custom_call.1} parent=1 // pred_check
      _
    $region3: #{tpu_custom_call.1} parent=1 // pred_check_branch
      %12 = sbr.rel (0) target = $region5
    $region4: #{tpu_custom_call.1} parent=1 // pred_region
      %s14 = ssub.s32 128, 128
      %15 = vsyncadd [#allocation3], %s14
      %s17 = sshll.u32 [#allocation2], 4
      %s18 = int_to_ptr.vmem [resolvable:$true] %s17
      %20 = dma.hbm_to_vmem [thread:$0]  %s0, 128, %s18, [#allocation3]
    $region5: #{tpu_custom_call.1} parent=1 // pred_fallthru
      _
    // Predicated region
    $region6: #{tpu_custom_call.1} parent=1 // pred_check
      _
    $region7: #{tpu_custom_call.1} parent=1 // pred_check_branch
      %22 = sbr.rel (0) target = $region9
    $region8: #{tpu_custom_call.1} parent=1 // pred_region
      %s24 = ssub.s32 1024, 1024
      %25 = vsyncadd [#allocation6], %s24
      %s26 = sshll.u32 [#allocation5], 4
      %s27 = int_to_ptr.vmem [resolvable:$true] %s26
      %32 = dma.hbm_to_vmem [thread:$0]  %s1, 1024, %s27, [#allocation6], 64, 64, 4
    $region9: #{tpu_custom_call.1} parent=1 // pred_fallthru
      _
    // Predicated region
    $region10: #{tpu_custom_call.1} parent=1 // pred_check
      _
    $region11: #{tpu_custom_call.1} parent=1 // pred_check_branch
      %34 = sbr.rel (0) target = $region13
    $region12: #{tpu_custom_call.1} parent=1 // pred_region
      %s36 = ssub.s32 1024, 1024
      %37 = vsyncadd [#allocation6], %s36
      %s38 = sshll.u32 [#allocation7], 4
      %s39 = int_to_ptr.vmem [resolvable:$true] %s38
      %44 = dma.hbm_to_vmem [thread:$0]  %s2, 1024, %s39, [#allocation6], 64, 64, 4
    $region13: #{tpu_custom_call.1} parent=1 // pred_fallthru
      _
    // Predicated region
    $region14: #{tpu_custom_call.1} parent=1 // pred_check
      _
    $region15: #{tpu_custom_call.1} parent=1 // pred_check_branch
      %46 = sbr.rel (0) target = $region17
    $region16: #{tpu_custom_call.1} parent=1 // pred_region
      %47 = dma.done [#allocation3], 128
    $region17: #{tpu_custom_call.1} parent=1 // pred_fallthru
      _
    // Predicated region
    $region18: #{tpu_custom_call.1} parent=1 // pred_check
      _
    $region19: #{tpu_custom_call.1} parent=1 // pred_check_branch
      %49 = sbr.rel (0) target = $region21
    $region20: #{tpu_custom_call.1} parent=1 // pred_region
      %50 = dma.done [#allocation6], 1024
    $region21: #{tpu_custom_call.1} parent=1 // pred_fallthru
      _
    // Predicated region
    $region22: #{tpu_custom_call.1} parent=1 // pred_check
      _
    $region23: #{tpu_custom_call.1} parent=1 // pred_check_branch
      %52 = sbr.rel (0) target = $region25
    $region24: #{tpu_custom_call.1} parent=1 // pred_region
      %53 = dma.done [#allocation6], 1024
    $region25: #{tpu_custom_call.1} parent=1 // pred_fallthru
      _
    %v55 = vld [vmem:[#allocation2] sm:$0xff]
    %v56 = vld [vmem:[#allocation5] sm:$0xf]
    %v57 = vld [vmem:[#allocation5 + $0x4] sm:$0xf]
    %v58 = vld [vmem:[#allocation5 + $0x8] sm:$0xf]
    %v59 = vld [vmem:[#allocation5 + $0xc] sm:$0xf]
    %v60 = vld [vmem:[#allocation5 + $0x10] sm:$0xf]
    %v61 = vld [vmem:[#allocation5 + $0x14] sm:$0xf]
    %v62 = vld [vmem:[#allocation5 + $0x18] sm:$0xf]
    %v63 = vld [vmem:[#allocation5 + $0x1c] sm:$0xf]
    %v64 = vld [vmem:[#allocation5 + $0x20] sm:$0xf]
    %v65 = vld [vmem:[#allocation5 + $0x24] sm:$0xf]
    %v66 = vld [vmem:[#allocation5 + $0x28] sm:$0xf]
    %v67 = vld [vmem:[#allocation5 + $0x2c] sm:$0xf]
    %v68 = vld [vmem:[#allocation5 + $0x30] sm:$0xf]
    %v69 = vld [vmem:[#allocation5 + $0x34] sm:$0xf]
    %v70 = vld [vmem:[#allocation5 + $0x38] sm:$0xf]
    %v71 = vld [vmem:[#allocation5 + $0x3c] sm:$0xf]
    %v72 = vunpack.c.l.bf16 %v56
    %v73 = vunpack.c.l.bf16 %v57
    %v74 = vunpack.c.l.bf16 %v58
    %v75 = vunpack.c.l.bf16 %v59
    %v76 = vunpack.c.l.bf16 %v60
    %v77 = vunpack.c.l.bf16 %v61
    %v78 = vunpack.c.l.bf16 %v62
    %v79 = vunpack.c.l.bf16 %v63
    %v80 = vunpack.c.l.bf16 %v64
    %v81 = vunpack.c.l.bf16 %v65
    %v82 = vunpack.c.l.bf16 %v66
    %v83 = vunpack.c.l.bf16 %v67
    %v84 = vunpack.c.l.bf16 %v68
    %v85 = vunpack.c.l.bf16 %v69
    %v86 = vunpack.c.l.bf16 %v70
    %v87 = vunpack.c.l.bf16 %v71
    %v88 = vlaneseq
    %v89 = vshrl.u32 %v88, 7
    %v90 = vsub.s32 0, %v89
    %v91 = vrot.slane %v55, %v90
    %93 = vbcast.lane.b32.xlu0 %v91, 256
    %v94 = vpop.permute.xlu0 %93
    %s96 = sor.u32 256, 8
    %97 = vbcast.lane.b32.xlu0 %v91, %s96
    %v98 = vpop.permute.xlu0 %97
    %v99 = vlaneseq
    %v100 = vshrl.u32 %v99, 7
    %v101 = vsub.s32 1, %v100
    %v102 = vrot.slane %v55, %v101
    %104 = vbcast.lane.b32.xlu0 %v102, 256
    %v105 = vpop.permute.xlu0 %104
    %s107 = sor.u32 256, 8
    %108 = vbcast.lane.b32.xlu0 %v102, %s107
    %v109 = vpop.permute.xlu0 %108
    %v110 = vlaneseq
    %v111 = vshrl.u32 %v110, 7
    %v112 = vsub.s32 2, %v111
    %v113 = vrot.slane %v55, %v112
    %115 = vbcast.lane.b32.xlu0 %v113, 256
    %v116 = vpop.permute.xlu0 %115
    %s118 = sor.u32 256, 8
    %119 = vbcast.lane.b32.xlu0 %v113, %s118
    %v120 = vpop.permute.xlu0 %119
    %v121 = vlaneseq
    %v122 = vshrl.u32 %v121, 7
    %v123 = vsub.s32 3, %v122
    %v124 = vrot.slane %v55, %v123
    %126 = vbcast.lane.b32.xlu0 %v124, 256
    %v127 = vpop.permute.xlu0 %126
    %s129 = sor.u32 256, 8
    %130 = vbcast.lane.b32.xlu0 %v124, %s129
    %v131 = vpop.permute.xlu0 %130
    %v132 = vlaneseq
    %v133 = vshrl.u32 %v132, 7
    %v134 = vsub.s32 4, %v133
    %v135 = vrot.slane %v55, %v134
    %137 = vbcast.lane.b32.xlu0 %v135, 256
    %v138 = vpop.permute.xlu0 %137
    %s140 = sor.u32 256, 8
    %141 = vbcast.lane.b32.xlu0 %v135, %s140
    %v142 = vpop.permute.xlu0 %141
    %v143 = vlaneseq
    %v144 = vshrl.u32 %v143, 7
    %v145 = vsub.s32 5, %v144
    %v146 = vrot.slane %v55, %v145
    %148 = vbcast.lane.b32.xlu0 %v146, 256
    %v149 = vpop.permute.xlu0 %148
    %s151 = sor.u32 256, 8
    %152 = vbcast.lane.b32.xlu0 %v146, %s151
    %v153 = vpop.permute.xlu0 %152
    %v154 = vlaneseq
    %v155 = vshrl.u32 %v154, 7
    %v156 = vsub.s32 6, %v155
    %v157 = vrot.slane %v55, %v156
    %159 = vbcast.lane.b32.xlu0 %v157, 256
    %v160 = vpop.permute.xlu0 %159
    %s162 = sor.u32 256, 8
    %163 = vbcast.lane.b32.xlu0 %v157, %s162
    %v164 = vpop.permute.xlu0 %163
    %v165 = vlaneseq
    %v166 = vshrl.u32 %v165, 7
    %v167 = vsub.s32 7, %v166
    %v168 = vrot.slane %v55, %v167
    %170 = vbcast.lane.b32.xlu0 %v168, 256
    %v171 = vpop.permute.xlu0 %170
    %s173 = sor.u32 256, 8
    %174 = vbcast.lane.b32.xlu0 %v168, %s173
    %v175 = vpop.permute.xlu0 %174
    %v176 = vmul.f32 %v72, %v94
    %v177 = vmul.f32 %v73, %v98
    %v178 = vmul.f32 %v74, %v105
    %v179 = vmul.f32 %v75, %v109
    %v180 = vmul.f32 %v76, %v116
    %v181 = vmul.f32 %v77, %v120
    %v182 = vmul.f32 %v78, %v127
    %v183 = vmul.f32 %v79, %v131
    %v184 = vmul.f32 %v80, %v138
    %v185 = vmul.f32 %v81, %v142
    %v186 = vmul.f32 %v82, %v149
    %v187 = vmul.f32 %v83, %v153
    %v188 = vmul.f32 %v84, %v160
    %v189 = vmul.f32 %v85, %v164
    %v190 = vmul.f32 %v86, %v171
    %v191 = vmul.f32 %v87, %v175
    %v192 = vadd.f32 %v176, %v177
    %v193 = vrot.slane %v192, 4
    %v194 = vadd.f32 %v192, %v193
    %v195 = vrot.slane %v194, 2
    %v196 = vadd.f32 %v194, %v195
    %v197 = vrot.slane %v196, 1
    %v198 = vadd.f32 %v196, %v197
    %v199 = vadd.f32 %v178, %v179
    %v200 = vrot.slane %v199, 4
    %v201 = vadd.f32 %v199, %v200
    %v202 = vrot.slane %v201, 2
    %v203 = vadd.f32 %v201, %v202
    %v204 = vrot.slane %v203, 1
    %v205 = vadd.f32 %v203, %v204
    %v206 = vadd.f32 %v180, %v181
    %v207 = vrot.slane %v206, 4
    %v208 = vadd.f32 %v206, %v207
    %v209 = vrot.slane %v208, 2
    %v210 = vadd.f32 %v208, %v209
    %v211 = vrot.slane %v210, 1
    %v212 = vadd.f32 %v210, %v211
    %v213 = vadd.f32 %v182, %v183
    %v214 = vrot.slane %v213, 4
    %v215 = vadd.f32 %v213, %v214
    %v216 = vrot.slane %v215, 2
    %v217 = vadd.f32 %v215, %v216
    %v218 = vrot.slane %v217, 1
    %v219 = vadd.f32 %v217, %v218
    %v220 = vadd.f32 %v184, %v185
    %v221 = vrot.slane %v220, 4
    %v222 = vadd.f32 %v220, %v221
    %v223 = vrot.slane %v222, 2
    %v224 = vadd.f32 %v222, %v223
    %v225 = vrot.slane %v224, 1
    %v226 = vadd.f32 %v224, %v225
    %v227 = vadd.f32 %v186, %v187
    %v228 = vrot.slane %v227, 4
    %v229 = vadd.f32 %v227, %v228
    %v230 = vrot.slane %v229, 2
    %v231 = vadd.f32 %v229, %v230
    %v232 = vrot.slane %v231, 1
    %v233 = vadd.f32 %v231, %v232
    %v234 = vadd.f32 %v188, %v189
    %v235 = vrot.slane %v234, 4
    %v236 = vadd.f32 %v234, %v235
    %v237 = vrot.slane %v236, 2
    %v238 = vadd.f32 %v236, %v237
    %v239 = vrot.slane %v238, 1
    %v240 = vadd.f32 %v238, %v239
    %v241 = vadd.f32 %v190, %v191
    %v242 = vrot.slane %v241, 4
    %v243 = vadd.f32 %v241, %v242
    %v244 = vrot.slane %v243, 2
    %v245 = vadd.f32 %v243, %v244
    %v246 = vrot.slane %v245, 1
    %v247 = vadd.f32 %v245, %v246
    %v248 = vpack.c.bf16 %v198, %v198
    %v249 = vpack.c.bf16 %v205, %v205
    %v250 = vpack.c.bf16 %v212, %v212
    %v251 = vpack.c.bf16 %v219, %v219
    %v252 = vpack.c.bf16 %v226, %v226
    %v253 = vpack.c.bf16 %v233, %v233
    %v254 = vpack.c.bf16 %v240, %v240
    %v255 = vpack.c.bf16 %v247, %v247
    %v256 = vld [vmem:[#allocation7] sm:$0xf]
    %v257 = vld [vmem:[#allocation7 + $0x4] sm:$0xf]
    %v258 = vld [vmem:[#allocation7 + $0x8] sm:$0xf]
    %v259 = vld [vmem:[#allocation7 + $0xc] sm:$0xf]
    %v260 = vld [vmem:[#allocation7 + $0x10] sm:$0xf]
    %v261 = vld [vmem:[#allocation7 + $0x14] sm:$0xf]
    %v262 = vld [vmem:[#allocation7 + $0x18] sm:$0xf]
    %v263 = vld [vmem:[#allocation7 + $0x1c] sm:$0xf]
    %v264 = vld [vmem:[#allocation7 + $0x20] sm:$0xf]
    %v265 = vld [vmem:[#allocation7 + $0x24] sm:$0xf]
    %v266 = vld [vmem:[#allocation7 + $0x28] sm:$0xf]
    %v267 = vld [vmem:[#allocation7 + $0x2c] sm:$0xf]
    %v268 = vld [vmem:[#allocation7 + $0x30] sm:$0xf]
    %v269 = vld [vmem:[#allocation7 + $0x34] sm:$0xf]
    %v270 = vld [vmem:[#allocation7 + $0x38] sm:$0xf]
    %v271 = vld [vmem:[#allocation7 + $0x3c] sm:$0xf]
    %v280 = vunpack.c.l.b16 %v248
    %v281 = vunpack.c.l.b16 %v249
    %v282 = vunpack.c.l.b16 %v250
    %v283 = vunpack.c.l.b16 %v251
    %v284 = vunpack.c.l.b16 %v252
    %v285 = vunpack.c.l.b16 %v253
    %v286 = vunpack.c.l.b16 %v254
    %v287 = vunpack.c.l.b16 %v255
    %vm288 = vcmask 1041409
    %v289 = vsel %vm288, %v281, %v280
    %vm290 = vcmask 1042434
    %v291 = vsel %vm290, %v282, %v289
    %vm292 = vcmask 1043459
    %v293 = vsel %vm292, %v283, %v291
    %vm294 = vcmask 1044484
    %v295 = vsel %vm294, %v284, %v293
    %vm296 = vcmask 1045509
    %v297 = vsel %vm296, %v285, %v295
    %vm298 = vcmask 1046534
    %v299 = vsel %vm298, %v286, %v297
    %vm300 = vcmask 1047559
    %v301 = vsel %vm300, %v287, %v299
    %v302 = vpack.c.b16 %v301, %v301
    %v320 = vunpack.c.l.b16 %v256
    %v321 = vunpack.c.l.b16 %v257
    %v322 = vunpack.c.l.b16 %v258
    %v323 = vunpack.c.l.b16 %v259
    %v324 = vunpack.c.l.b16 %v260
    %v325 = vunpack.c.l.b16 %v261
    %v326 = vunpack.c.l.b16 %v262
    %v327 = vunpack.c.l.b16 %v263
    %v328 = vunpack.c.l.b16 %v264
    %v329 = vunpack.c.l.b16 %v265
    %v330 = vunpack.c.l.b16 %v266
    %v331 = vunpack.c.l.b16 %v267
    %v332 = vunpack.c.l.b16 %v268
    %v333 = vunpack.c.l.b16 %v269
    %v334 = vunpack.c.l.b16 %v270
    %v335 = vunpack.c.l.b16 %v271
    %v336 = vpack.c.b16 %v321, %v320
    %v337 = vpack.c.b16 %v323, %v322
    %v338 = vpack.c.b16 %v325, %v324
    %v339 = vpack.c.b16 %v327, %v326
    %v340 = vpack.c.b16 %v329, %v328
    %v341 = vpack.c.b16 %v331, %v330
    %v342 = vpack.c.b16 %v333, %v332
    %v343 = vpack.c.b16 %v335, %v334
    %352 = vmatprep.subr.bf16.mxu0 0
    %353 = vmatpush1.bf16.msra.mxu0 %v343
    %354 = vmatprep.subr.bf16.mxu0 0
    %355 = vmatpush1.bf16.msra.mxu0 %v342
    %356 = vmatprep.subr.bf16.mxu0 0
    %357 = vmatpush1.bf16.msra.mxu0 %v341
    %358 = vmatprep.subr.bf16.mxu0 0
    %359 = vmatpush1.bf16.msra.mxu0 %v340
    %360 = vmatprep.subr.bf16.mxu0 0
    %361 = vmatpush1.bf16.msra.mxu0 %v339
    %362 = vmatprep.subr.bf16.mxu0 0
    %363 = vmatpush1.bf16.msra.mxu0 %v338
    %364 = vmatprep.subr.bf16.mxu0 0
    %365 = vmatpush1.bf16.msra.mxu0 %v337
    %366 = vmatprep.subr.bf16.mxu0 0
    %367 = vmatpush1.bf16.msra.mxu0 %v336
    %368 = vmatprep.subr.bf16.mxu0 0
    %369 = vmatpush2.bf16.msra.mxu0 0
    %370 = vmatprep.subr.bf16.mxu0 0
    %371 = vmatpush2.bf16.msra.mxu0 0
    %372 = vmatprep.subr.bf16.mxu0 0
    %373 = vmatpush2.bf16.msra.mxu0 0
    %374 = vmatprep.subr.bf16.mxu0 0
    %375 = vmatpush2.bf16.msra.mxu0 0
    %376 = vmatprep.subr.bf16.mxu0 0
    %377 = vmatpush2.bf16.msra.mxu0 0
    %378 = vmatprep.subr.bf16.mxu0 0
    %379 = vmatpush2.bf16.msra.mxu0 0
    %380 = vmatprep.subr.bf16.mxu0 0
    %381 = vmatpush2.bf16.msra.mxu0 0
    %382 = vmatprep.subr.bf16.mxu0 0
    %383 = vmatpush2.bf16.msra.mxu0 0
    %384 = vmatprep.mubr.bf16.mxu0 0
    %385 = vmatmul.mubr.bf16.gmra.mxu0 %v302
    %v386 = vpop.f32.mrf.mxu0
    %v387 = vadd.f32 0.0, %v386
    %v388 = vpop.f32.mrf.mxu0
    %v389 = vpop.f32.mrf.mxu0
    %v390 = vpop.f32.mrf.mxu0
    %391 = vdwg.mxu0
    %v392 = vmul.f32 %v387, %v387
    %393 = vadd.xlane.f32.xlu0 %v392
    %v394 = vpop.xlane.xlu0 %393
    %v395 = vmax.f32 %v394, 1e-24
    %v396 = vrsqrt.pop %v395
    %v397 = vmul.f32 %v387, %v396
    %398 = vst [vmem:[#allocation8] sm:$0xff] %v397
    // Predicated region
    $region26: #{tpu_custom_call.1} parent=1 // pred_check
      _
    $region27: #{tpu_custom_call.1} parent=1 // pred_check_branch
      %400 = sbr.rel (0) target = $region29
    $region28: #{tpu_custom_call.1} parent=1 // pred_region
      %s402 = ssub.s32 128, 128
      %403 = vsyncadd [#allocation4], %s402
      %s405 = sshll.u32 [#allocation8], 4
      %s406 = int_to_ptr.vmem [resolvable:$true] %s405
      %408 = dma.vmem_to_hbm [thread:$0]  %s406, 128, %s3, [#allocation4]
    $region29: #{tpu_custom_call.1} parent=1 // pred_fallthru
      _
    // Predicated region
    $region30: #{tpu_custom_call.1} parent=1 // pred_check
      _
    $region31: #{tpu_custom_call.1} parent=1 // pred_check_branch
      %410 = sbr.rel (0) target = $region33
    $region32: #{tpu_custom_call.1} parent=1 // pred_region
      %411 = dma.done [#allocation4], 128
    $region33: #{tpu_custom_call.1} parent=1 // pred_fallthru
      _
    %412 = vsyncpa [#allocation3], 1
    %413 = vsyncpa [#allocation6], 1
    %414 = vsyncpa [#allocation4], 1

// kernel: tpu_custom_call.1
$region0: #{tpu_custom_call.1}
  #allocation0 [shape = 'u32[]', space=smem, size = 0x4, offset = 0x4, fixed_abs, tag = 'smem constant byte address 0x4 - core index']
  #allocation1 [shape = 'u32[144,128]{1,0:T(1,128)}', space=vmem, size = 0x12000, scoped, tag = 'internal scratch']
  %s0 = inlined_call_operand.hbm [shape: f32[8,16], index: 0, kind: input, shape index: {}]
  %s1 = inlined_call_operand.hbm [shape: bf16[8,16,128], index: 1, kind: input, shape index: {}]
  %s2 = inlined_call_operand.hbm [shape: bf16[128,128], index: 2, kind: input, shape index: {}]
  %s3 = inlined_call_operand.hbm [shape: f32[8,128], index: 3, kind: output, shape index: {}]
  %s4 = sld [smem:[#allocation0]]
  $region34: #{tpu_custom_call.1} parent=0
    _
  %s6 = ssub.s32 1, %s4
  %s7 = scalar_select 0, %s6, %s4
  $region1: #{tpu_custom_call.1} parent=0
    #allocation2 [shape = 'u8[4096]{0}', space=vmem, size = 0x1000, scoped, tag = 'input window, operand 0, single buffered']
    #allocation3 [shape = 's32[1]{0}', space=sflag, size = 0x4, scoped, tag = 'scoped memory for tpu_custom_call.1']
    #allocation4 [shape = 's32[1]{0}', space=sflag, size = 0x4, scoped, tag = 'scoped memory for tpu_custom_call.1']
    #allocation5 [shape = 'u8[32768]{0}', space=vmem, size = 0x8000, scoped, tag = 'input window, operand 1, single buffered']
    #allocation6 [shape = 's32[1]{0}', space=sflag, size = 0x4, scoped, tag = 'scoped memory for tpu_custom_call.1']
    #allocation7 [shape = 'u8[32768]{0}', space=vmem, size = 0x8000, scoped, tag = 'input window, operand 2, single buffered']
    #allocation8 [shape = 'u8[4096]{0}', space=vmem, size = 0x1000, scoped, tag = 'output window, operand 0, single buffered']
    %8 = vsyncpa [#allocation3], 0
    %9 = vsyncpa [#allocation6], 0
    %10 = vsyncpa [#allocation4], 0
    // Predicated region
    $region2: #{tpu_custom_call.1} parent=1 // pred_check
      _
    $region3: #{tpu_custom_call.1} parent=1 // pred_check_branch
      %12 = sbr.rel (0) target = $region5
    $region4: #{tpu_custom_call.1} parent=1 // pred_region
      %s14 = ssub.s32 128, 128
      %15 = vsyncadd [#allocation3], %s14
      %s17 = sshll.u32 [#allocation2], 4
      %s18 = int_to_ptr.vmem [resolvable:$true] %s17
      %20 = dma.hbm_to_vmem [thread:$0]  %s0, 128, %s18, [#allocation3]
    $region5: #{tpu_custom_call.1} parent=1 // pred_fallthru
      _
    // Predicated region
    $region6: #{tpu_custom_call.1} parent=1 // pred_check
      _
    $region7: #{tpu_custom_call.1} parent=1 // pred_check_branch
      %22 = sbr.rel (0) target = $region9
    $region8: #{tpu_custom_call.1} parent=1 // pred_region
      %s24 = ssub.s32 1024, 1024
      %25 = vsyncadd [#allocation6], %s24
      %s26 = sshll.u32 [#allocation5], 4
      %s27 = int_to_ptr.vmem [resolvable:$true] %s26
      %32 = dma.hbm_to_vmem [thread:$0]  %s1, 1024, %s27, [#allocation6], 64, 64, 4
    $region9: #{tpu_custom_call.1} parent=1 // pred_fallthru
      _
    // Predicated region
    $region10: #{tpu_custom_call.1} parent=1 // pred_check
      _
    $region11: #{tpu_custom_call.1} parent=1 // pred_check_branch
      %34 = sbr.rel (0) target = $region13
    $region12: #{tpu_custom_call.1} parent=1 // pred_region
      %s36 = ssub.s32 1024, 1024
      %37 = vsyncadd [#allocation6], %s36
      %s38 = sshll.u32 [#allocation7], 4
      %s39 = int_to_ptr.vmem [resolvable:$true] %s38
      %44 = dma.hbm_to_vmem [thread:$0]  %s2, 1024, %s39, [#allocation6], 64, 64, 4
    $region13: #{tpu_custom_call.1} parent=1 // pred_fallthru
      _
    // Predicated region
    $region14: #{tpu_custom_call.1} parent=1 // pred_check
      _
    $region15: #{tpu_custom_call.1} parent=1 // pred_check_branch
      %46 = sbr.rel (0) target = $region17
    $region16: #{tpu_custom_call.1} parent=1 // pred_region
      %47 = dma.done [#allocation3], 128
    $region17: #{tpu_custom_call.1} parent=1 // pred_fallthru
      _
    // Predicated region
    $region18: #{tpu_custom_call.1} parent=1 // pred_check
      _
    $region19: #{tpu_custom_call.1} parent=1 // pred_check_branch
      %49 = sbr.rel (0) target = $region21
    $region20: #{tpu_custom_call.1} parent=1 // pred_region
      %50 = dma.done [#allocation6], 1024
    $region21: #{tpu_custom_call.1} parent=1 // pred_fallthru
      _
    // Predicated region
    $region22: #{tpu_custom_call.1} parent=1 // pred_check
      _
    $region23: #{tpu_custom_call.1} parent=1 // pred_check_branch
      %52 = sbr.rel (0) target = $region25
    $region24: #{tpu_custom_call.1} parent=1 // pred_region
      %53 = dma.done [#allocation6], 1024
    $region25: #{tpu_custom_call.1} parent=1 // pred_fallthru
      _
    %v55 = vld [vmem:[#allocation2] sm:$0xff]
    %v56 = vld [vmem:[#allocation5] sm:$0xf]
    %v57 = vld [vmem:[#allocation5 + $0x4] sm:$0xf]
    %v58 = vld [vmem:[#allocation5 + $0x8] sm:$0xf]
    %v59 = vld [vmem:[#allocation5 + $0xc] sm:$0xf]
    %v60 = vld [vmem:[#allocation5 + $0x10] sm:$0xf]
    %v61 = vld [vmem:[#allocation5 + $0x14] sm:$0xf]
    %v62 = vld [vmem:[#allocation5 + $0x18] sm:$0xf]
    %v63 = vld [vmem:[#allocation5 + $0x1c] sm:$0xf]
    %v64 = vld [vmem:[#allocation5 + $0x20] sm:$0xf]
    %v65 = vld [vmem:[#allocation5 + $0x24] sm:$0xf]
    %v66 = vld [vmem:[#allocation5 + $0x28] sm:$0xf]
    %v67 = vld [vmem:[#allocation5 + $0x2c] sm:$0xf]
    %v68 = vld [vmem:[#allocation5 + $0x30] sm:$0xf]
    %v69 = vld [vmem:[#allocation5 + $0x34] sm:$0xf]
    %v70 = vld [vmem:[#allocation5 + $0x38] sm:$0xf]
    %v71 = vld [vmem:[#allocation5 + $0x3c] sm:$0xf]
    %v72 = vunpack.c.l.bf16 %v56
    %v73 = vunpack.c.l.bf16 %v57
    %v74 = vunpack.c.l.bf16 %v58
    %v75 = vunpack.c.l.bf16 %v59
    %v76 = vunpack.c.l.bf16 %v60
    %v77 = vunpack.c.l.bf16 %v61
    %v78 = vunpack.c.l.bf16 %v62
    %v79 = vunpack.c.l.bf16 %v63
    %v80 = vunpack.c.l.bf16 %v64
    %v81 = vunpack.c.l.bf16 %v65
    %v82 = vunpack.c.l.bf16 %v66
    %v83 = vunpack.c.l.bf16 %v67
    %v84 = vunpack.c.l.bf16 %v68
    %v85 = vunpack.c.l.bf16 %v69
    %v86 = vunpack.c.l.bf16 %v70
    %v87 = vunpack.c.l.bf16 %v71
    %v88 = vlaneseq
    %v89 = vshrl.u32 %v88, 7
    %v90 = vsub.s32 0, %v89
    %v91 = vrot.slane %v55, %v90
    %93 = vbcast.lane.b32.xlu0 %v91, 256
    %v94 = vpop.permute.xlu0 %93
    %s96 = sor.u32 256, 8
    %97 = vbcast.lane.b32.xlu0 %v91, %s96
    %v98 = vpop.permute.xlu0 %97
    %v99 = vlaneseq
    %v100 = vshrl.u32 %v99, 7
    %v101 = vsub.s32 1, %v100
    %v102 = vrot.slane %v55, %v101
    %104 = vbcast.lane.b32.xlu0 %v102, 256
    %v105 = vpop.permute.xlu0 %104
    %s107 = sor.u32 256, 8
    %108 = vbcast.lane.b32.xlu0 %v102, %s107
    %v109 = vpop.permute.xlu0 %108
    %v110 = vlaneseq
    %v111 = vshrl.u32 %v110, 7
    %v112 = vsub.s32 2, %v111
    %v113 = vrot.slane %v55, %v112
    %115 = vbcast.lane.b32.xlu0 %v113, 256
    %v116 = vpop.permute.xlu0 %115
    %s118 = sor.u32 256, 8
    %119 = vbcast.lane.b32.xlu0 %v113, %s118
    %v120 = vpop.permute.xlu0 %119
    %v121 = vlaneseq
    %v122 = vshrl.u32 %v121, 7
    %v123 = vsub.s32 3, %v122
    %v124 = vrot.slane %v55, %v123
    %126 = vbcast.lane.b32.xlu0 %v124, 256
    %v127 = vpop.permute.xlu0 %126
    %s129 = sor.u32 256, 8
    %130 = vbcast.lane.b32.xlu0 %v124, %s129
    %v131 = vpop.permute.xlu0 %130
    %v132 = vlaneseq
    %v133 = vshrl.u32 %v132, 7
    %v134 = vsub.s32 4, %v133
    %v135 = vrot.slane %v55, %v134
    %137 = vbcast.lane.b32.xlu0 %v135, 256
    %v138 = vpop.permute.xlu0 %137
    %s140 = sor.u32 256, 8
    %141 = vbcast.lane.b32.xlu0 %v135, %s140
    %v142 = vpop.permute.xlu0 %141
    %v143 = vlaneseq
    %v144 = vshrl.u32 %v143, 7
    %v145 = vsub.s32 5, %v144
    %v146 = vrot.slane %v55, %v145
    %148 = vbcast.lane.b32.xlu0 %v146, 256
    %v149 = vpop.permute.xlu0 %148
    %s151 = sor.u32 256, 8
    %152 = vbcast.lane.b32.xlu0 %v146, %s151
    %v153 = vpop.permute.xlu0 %152
    %v154 = vlaneseq
    %v155 = vshrl.u32 %v154, 7
    %v156 = vsub.s32 6, %v155
    %v157 = vrot.slane %v55, %v156
    %159 = vbcast.lane.b32.xlu0 %v157, 256
    %v160 = vpop.permute.xlu0 %159
    %s162 = sor.u32 256, 8
    %163 = vbcast.lane.b32.xlu0 %v157, %s162
    %v164 = vpop.permute.xlu0 %163
    %v165 = vlaneseq
    %v166 = vshrl.u32 %v165, 7
    %v167 = vsub.s32 7, %v166
    %v168 = vrot.slane %v55, %v167
    %170 = vbcast.lane.b32.xlu0 %v168, 256
    %v171 = vpop.permute.xlu0 %170
    %s173 = sor.u32 256, 8
    %174 = vbcast.lane.b32.xlu0 %v168, %s173
    %v175 = vpop.permute.xlu0 %174
    %v176 = vmul.f32 %v72, %v94
    %v177 = vmul.f32 %v73, %v98
    %v178 = vmul.f32 %v74, %v105
    %v179 = vmul.f32 %v75, %v109
    %v180 = vmul.f32 %v76, %v116
    %v181 = vmul.f32 %v77, %v120
    %v182 = vmul.f32 %v78, %v127
    %v183 = vmul.f32 %v79, %v131
    %v184 = vmul.f32 %v80, %v138
    %v185 = vmul.f32 %v81, %v142
    %v186 = vmul.f32 %v82, %v149
    %v187 = vmul.f32 %v83, %v153
    %v188 = vmul.f32 %v84, %v160
    %v189 = vmul.f32 %v85, %v164
    %v190 = vmul.f32 %v86, %v171
    %v191 = vmul.f32 %v87, %v175
    %v192 = vadd.f32 %v176, %v177
    %v193 = vrot.slane %v192, 4
    %v194 = vadd.f32 %v192, %v193
    %v195 = vrot.slane %v194, 2
    %v196 = vadd.f32 %v194, %v195
    %v197 = vrot.slane %v196, 1
    %v198 = vadd.f32 %v196, %v197
    %v199 = vadd.f32 %v178, %v179
    %v200 = vrot.slane %v199, 4
    %v201 = vadd.f32 %v199, %v200
    %v202 = vrot.slane %v201, 2
    %v203 = vadd.f32 %v201, %v202
    %v204 = vrot.slane %v203, 1
    %v205 = vadd.f32 %v203, %v204
    %v206 = vadd.f32 %v180, %v181
    %v207 = vrot.slane %v206, 4
    %v208 = vadd.f32 %v206, %v207
    %v209 = vrot.slane %v208, 2
    %v210 = vadd.f32 %v208, %v209
    %v211 = vrot.slane %v210, 1
    %v212 = vadd.f32 %v210, %v211
    %v213 = vadd.f32 %v182, %v183
    %v214 = vrot.slane %v213, 4
    %v215 = vadd.f32 %v213, %v214
    %v216 = vrot.slane %v215, 2
    %v217 = vadd.f32 %v215, %v216
    %v218 = vrot.slane %v217, 1
    %v219 = vadd.f32 %v217, %v218
    %v220 = vadd.f32 %v184, %v185
    %v221 = vrot.slane %v220, 4
    %v222 = vadd.f32 %v220, %v221
    %v223 = vrot.slane %v222, 2
    %v224 = vadd.f32 %v222, %v223
    %v225 = vrot.slane %v224, 1
    %v226 = vadd.f32 %v224, %v225
    %v227 = vadd.f32 %v186, %v187
    %v228 = vrot.slane %v227, 4
    %v229 = vadd.f32 %v227, %v228
    %v230 = vrot.slane %v229, 2
    %v231 = vadd.f32 %v229, %v230
    %v232 = vrot.slane %v231, 1
    %v233 = vadd.f32 %v231, %v232
    %v234 = vadd.f32 %v188, %v189
    %v235 = vrot.slane %v234, 4
    %v236 = vadd.f32 %v234, %v235
    %v237 = vrot.slane %v236, 2
    %v238 = vadd.f32 %v236, %v237
    %v239 = vrot.slane %v238, 1
    %v240 = vadd.f32 %v238, %v239
    %v241 = vadd.f32 %v190, %v191
    %v242 = vrot.slane %v241, 4
    %v243 = vadd.f32 %v241, %v242
    %v244 = vrot.slane %v243, 2
    %v245 = vadd.f32 %v243, %v244
    %v246 = vrot.slane %v245, 1
    %v247 = vadd.f32 %v245, %v246
    %v248 = vpack.c.bf16 %v198, %v198
    %v249 = vpack.c.bf16 %v205, %v205
    %v250 = vpack.c.bf16 %v212, %v212
    %v251 = vpack.c.bf16 %v219, %v219
    %v252 = vpack.c.bf16 %v226, %v226
    %v253 = vpack.c.bf16 %v233, %v233
    %v254 = vpack.c.bf16 %v240, %v240
    %v255 = vpack.c.bf16 %v247, %v247
    %v256 = vld [vmem:[#allocation7] sm:$0xf]
    %v257 = vld [vmem:[#allocation7 + $0x4] sm:$0xf]
    %v258 = vld [vmem:[#allocation7 + $0x8] sm:$0xf]
    %v259 = vld [vmem:[#allocation7 + $0xc] sm:$0xf]
    %v260 = vld [vmem:[#allocation7 + $0x10] sm:$0xf]
    %v261 = vld [vmem:[#allocation7 + $0x14] sm:$0xf]
    %v262 = vld [vmem:[#allocation7 + $0x18] sm:$0xf]
    %v263 = vld [vmem:[#allocation7 + $0x1c] sm:$0xf]
    %v264 = vld [vmem:[#allocation7 + $0x20] sm:$0xf]
    %v265 = vld [vmem:[#allocation7 + $0x24] sm:$0xf]
    %v266 = vld [vmem:[#allocation7 + $0x28] sm:$0xf]
    %v267 = vld [vmem:[#allocation7 + $0x2c] sm:$0xf]
    %v268 = vld [vmem:[#allocation7 + $0x30] sm:$0xf]
    %v269 = vld [vmem:[#allocation7 + $0x34] sm:$0xf]
    %v270 = vld [vmem:[#allocation7 + $0x38] sm:$0xf]
    %v271 = vld [vmem:[#allocation7 + $0x3c] sm:$0xf]
    %v280 = vunpack.c.l.b16 %v248
    %v281 = vunpack.c.l.b16 %v249
    %v282 = vunpack.c.l.b16 %v250
    %v283 = vunpack.c.l.b16 %v251
    %v284 = vunpack.c.l.b16 %v252
    %v285 = vunpack.c.l.b16 %v253
    %v286 = vunpack.c.l.b16 %v254
    %v287 = vunpack.c.l.b16 %v255
    %vm288 = vcmask 1041409
    %v289 = vsel %vm288, %v281, %v280
    %vm290 = vcmask 1042434
    %v291 = vsel %vm290, %v282, %v289
    %vm292 = vcmask 1043459
    %v293 = vsel %vm292, %v283, %v291
    %vm294 = vcmask 1044484
    %v295 = vsel %vm294, %v284, %v293
    %vm296 = vcmask 1045509
    %v297 = vsel %vm296, %v285, %v295
    %vm298 = vcmask 1046534
    %v299 = vsel %vm298, %v286, %v297
    %vm300 = vcmask 1047559
    %v301 = vsel %vm300, %v287, %v299
    %v302 = vpack.c.b16 %v301, %v301
    %v320 = vunpack.c.l.b16 %v256
    %v321 = vunpack.c.l.b16 %v257
    %v322 = vunpack.c.l.b16 %v258
    %v323 = vunpack.c.l.b16 %v259
    %v324 = vunpack.c.l.b16 %v260
    %v325 = vunpack.c.l.b16 %v261
    %v326 = vunpack.c.l.b16 %v262
    %v327 = vunpack.c.l.b16 %v263
    %v328 = vunpack.c.l.b16 %v264
    %v329 = vunpack.c.l.b16 %v265
    %v330 = vunpack.c.l.b16 %v266
    %v331 = vunpack.c.l.b16 %v267
    %v332 = vunpack.c.l.b16 %v268
    %v333 = vunpack.c.l.b16 %v269
    %v334 = vunpack.c.l.b16 %v270
    %v335 = vunpack.c.l.b16 %v271
    %v336 = vpack.c.b16 %v321, %v320
    %v337 = vpack.c.b16 %v323, %v322
    %v338 = vpack.c.b16 %v325, %v324
    %v339 = vpack.c.b16 %v327, %v326
    %v340 = vpack.c.b16 %v329, %v328
    %v341 = vpack.c.b16 %v331, %v330
    %v342 = vpack.c.b16 %v333, %v332
    %v343 = vpack.c.b16 %v335, %v334
    %352 = vmatprep.subr.bf16.mxu0 0
    %353 = vmatpush1.bf16.msra.mxu0 %v343
    %354 = vmatprep.subr.bf16.mxu0 0
    %355 = vmatpush1.bf16.msra.mxu0 %v342
    %356 = vmatprep.subr.bf16.mxu0 0
    %357 = vmatpush1.bf16.msra.mxu0 %v341
    %358 = vmatprep.subr.bf16.mxu0 0
    %359 = vmatpush1.bf16.msra.mxu0 %v340
    %360 = vmatprep.subr.bf16.mxu0 0
    %361 = vmatpush1.bf16.msra.mxu0 %v339
    %362 = vmatprep.subr.bf16.mxu0 0
    %363 = vmatpush1.bf16.msra.mxu0 %v338
    %364 = vmatprep.subr.bf16.mxu0 0
    %365 = vmatpush1.bf16.msra.mxu0 %v337
    %366 = vmatprep.subr.bf16.mxu0 0
    %367 = vmatpush1.bf16.msra.mxu0 %v336
    %368 = vmatprep.subr.bf16.mxu0 0
    %369 = vmatpush2.bf16.msra.mxu0 0
    %370 = vmatprep.subr.bf16.mxu0 0
    %371 = vmatpush2.bf16.msra.mxu0 0
    %372 = vmatprep.subr.bf16.mxu0 0
    %373 = vmatpush2.bf16.msra.mxu0 0
    %374 = vmatprep.subr.bf16.mxu0 0
    %375 = vmatpush2.bf16.msra.mxu0 0
    %376 = vmatprep.subr.bf16.mxu0 0
    %377 = vmatpush2.bf16.msra.mxu0 0
    %378 = vmatprep.subr.bf16.mxu0 0
    %379 = vmatpush2.bf16.msra.mxu0 0
    %380 = vmatprep.subr.bf16.mxu0 0
    %381 = vmatpush2.bf16.msra.mxu0 0
    %382 = vmatprep.subr.bf16.mxu0 0
    %383 = vmatpush2.bf16.msra.mxu0 0
    %384 = vmatprep.mubr.bf16.mxu0 0
    %385 = vmatmul.mubr.bf16.gmra.mxu0 %v302
    %v386 = vpop.f32.mrf.mxu0
    %v387 = vadd.f32 0.0, %v386
    %v388 = vpop.f32.mrf.mxu0
    %v389 = vpop.f32.mrf.mxu0
    %v390 = vpop.f32.mrf.mxu0
    %391 = vdwg.mxu0
    %v392 = vmul.f32 %v387, %v387
    %393 = vadd.xlane.f32.xlu0 %v392
    %v394 = vpop.xlane.xlu0 %393
    %v395 = vmax.f32 %v394, 1e-24
    %v396 = vrsqrt.pop %v395
    %v397 = vmul.f32 %v387, %v396
    %398 = vst [vmem:[#allocation8] sm:$0xff] %v397
    // Predicated region
    $region26: #{tpu_custom_call.1} parent=1 // pred_check
      _
    $region27: #{tpu_custom_call.1} parent=1 // pred_check_branch
      %400 = sbr.rel (0) target = $region29
    $region28: #{tpu_custom_call.1} parent=1 // pred_region
      %s402 = ssub.s32 128, 128
      %403 = vsyncadd [#allocation4], %s402
      %s405 = sshll.u32 [#allocation8], 4
      %s406 = int_to_ptr.vmem [resolvable:$true] %s405
      %408 = dma.vmem_to_hbm [thread:$0]  %s406, 128, %s3, [#allocation4]
    $region29: #{tpu_custom_call.1} parent=1 // pred_fallthru
      _
    // Predicated region
    $region30: #{tpu_custom_call.1} parent=1 // pred_check
      _
    $region31: #{tpu_custom_call.1} parent=1 // pred_check_branch
      %410 = sbr.rel (0) target = $region33
    $region32: #{tpu_custom_call.1} parent=1 // pred_region
      %411 = dma.done [#allocation4], 128
    $region33: #{tpu_custom_call.1} parent=1 // pred_fallthru
      _
    %412 = vsyncpa [#allocation3], 1
    %413 = vsyncpa [#allocation6], 1
    %414 = vsyncpa [#allocation4], 1

</llo_original>
